<compile_context>
chip_gen: v7x
topology: tpu7x:2x2x1
jax: 0.10.0
libtpu: 0.0.40
codegen_flags: <defaults>
</compile_context>

<pallas_src>
import jax
import jax.numpy as jnp
from jax.experimental import pallas as pl
from jax.experimental.pallas import tpu as pltpu  # noqa: F401  (reserved for dropout TODO)

block_size = 8       # max sequence length (tril buffer size)
n_embd = 384
head_size = 64


def head_kernel(x_ref, w_ref, o_ref):
    # x_ref: (B, T, C) in caller dtype; w_ref: (C, 3H) bf16 fused [K | Q*scale | V]
    B, T, C = x_ref.shape
    H = w_ref.shape[1] // 3

    # Cast to bf16 in-kernel (hides under the MXU), then one batched projection:
    # (B, T, C) x (C, 3H) -> (B, T, 3H), f32 accumulation. No reshapes.
    x = x_ref[...].astype(jnp.bfloat16)
    kqv = jax.lax.dot_general(
        x, w_ref[...], (((2,), (0,)), ((), ())),
        preferred_element_type=jnp.float32)                              # (B, T, 3H) f32

    k = kqv[..., 0 * H:1 * H]
    q = kqv[..., 1 * H:2 * H]   # 1/sqrt(H) already folded into W_q (exact: 2^-3)
    v = kqv[..., 2 * H:3 * H]

    # Scores: batched contraction over H (no explicit k transpose / XLU work).
    wei = jax.lax.dot_general(
        q, k, (((2,), (2,)), ((0,), (0,))),
        preferred_element_type=jnp.float32)                              # (B, T, T)

    # Causal (lower-triangular) mask == tril[:T, :T]; large finite negative is
    # NaN-safe because the diagonal is always unmasked.
    row = jax.lax.broadcasted_iota(jnp.int32, (T, T), 0)
    col = jax.lax.broadcasted_iota(jnp.int32, (T, T), 1)
    wei = jnp.where(col <= row, wei, jnp.float32(-1e30))

    # Softmax along last dim (kept f32: v5e has no bf16 VPU/EUP).
    wei = wei - jnp.max(wei, axis=-1, keepdims=True)
    p = jnp.exp(wei)
    p = p * pl.reciprocal(jnp.sum(p, axis=-1, keepdims=True), approx=True)

    # Dropout: identity (eval mode).
    # TODO(synk): training-mode dropout via pltpu.prng_seed + pltpu.prng_random_bits.

    # Weighted aggregation of values. Kept f32: contracted dim is T=8, so MXU
    # time is negligible and bf16 casts of p/v would be pure extra VPU work.
    out = jax.lax.dot_general(
        p, v, (((2,), (1,)), ((0,), (0,))),
        preferred_element_type=jnp.float32)                              # (B, T, H)
    o_ref[...] = out.astype(o_ref.dtype)


def fuse_head_weights(wk, wq, wv):
    """One-time (init-time) weight fusion. Call once and reuse the result.

    wk/wq/wv: (C, H) (already transposed vs. nn.Linear.weight).
    Returns the fused bf16 (C, 3H) weight [K | Q * H**-0.5 | V].
    """
    H = wk.shape[1]
    scale = jnp.asarray(H, jnp.float32) ** -0.5   # 2^-3 for H=64: exact in bf16
    return jnp.concatenate([wk, wq * scale, wv], axis=1).astype(jnp.bfloat16)


def head_forward(x, w_qkv):
    """x: (B, T, C) in native dtype; w_qkv: fused (C, 3H) bf16 from fuse_head_weights."""
    B, T, C = x.shape
    H3 = w_qkv.shape[1]
    H = H3 // 3
    out_dtype = x.dtype

    # Advisory cost estimate: projection + QK^T + PV flops, softmax exp count,
    # and the HBM bytes touched (x + fused weight + output).
    flops = 2 * B * T * C * H3 + 2 * B * T * T * H + 2 * B * T * T * H
    bytes_accessed = (x.size * x.dtype.itemsize
                      + w_qkv.size * w_qkv.dtype.itemsize
                      + B * T * H * jnp.dtype(out_dtype).itemsize)

    # Single grid-less invocation: everything fits comfortably in VMEM on
    # v5e/v6e and v7x (64 MiB), so a grid would only add per-step overhead.
    return pl.pallas_call(
        head_kernel,
        out_shape=jax.ShapeDtypeStruct((B, T, H), out_dtype),
        in_specs=[
            pl.BlockSpec((B, T, C), lambda: (0, 0, 0)),
            pl.BlockSpec((C, H3), lambda: (0, 0)),
        ],
        out_specs=pl.BlockSpec((B, T, H), lambda: (0, 0, 0)),
        cost_estimate=pl.CostEstimate(
            flops=flops,
            transcendentals=B * T * T,
            bytes_accessed=bytes_accessed),
    )(x, w_qkv)


def head_reference(x, wk, wq, wv):
    """Pure-JAX f32 reference mirroring the PyTorch forward (eval mode)."""
    k = x @ wk
    q = x @ wq
    v = x @ wv
    wei = (q @ jnp.swapaxes(k, -2, -1)) * (k.shape[-1] ** -0.5)
    T = x.shape[1]
    tril = jnp.tril(jnp.ones((T, T), dtype=bool))
    wei = jnp.where(tril, wei, -jnp.inf)
    wei = jax.nn.softmax(wei, axis=-1)
    return wei @ v


if __name__ == "__main__":
    key = jax.random.PRNGKey(0)
    kx, kk, kq, kv = jax.random.split(key, 4)

    B, T, C, H = 2, block_size, n_embd, head_size

    x = jax.random.normal(kx, (B, T, C), dtype=jnp.float32)
    # nn.Linear(n_embd, head_size, bias=False).weight has shape (H, C);
    # pass the transpose (C, H) so the kernel computes x @ W.T.
    w_scale = 1.0 / jnp.sqrt(jnp.float32(C))
    wk = (jax.random.normal(kk, (H, C), dtype=jnp.float32) * w_scale).T
    wq = (jax.random.normal(kq, (H, C), dtype=jnp.float32) * w_scale).T
    wv = (jax.random.normal(kv, (H, C), dtype=jnp.float32) * w_scale).T

    # Weight fusion happens once, at init time (not in the per-call path).
    w_qkv = jax.block_until_ready(fuse_head_weights(wk, wq, wv))

    out = head_forward(x, w_qkv)
    out = jax.block_until_ready(out)

    ref = head_reference(x, wk, wq, wv)
    assert out.shape == (B, T, H)
    # bf16 MXU inputs + approx reciprocal -> slightly looser tolerance than pure f32.
    assert jnp.allclose(out, ref, atol=2e-2, rtol=2e-2), float(jnp.max(jnp.abs(out - ref)))

    print("KERNEL_OK")
</pallas_src>

<mosaic_0001>
module attributes {stable_mosaic.version = 11 : i64} {
  func.func @head_kernel(%arg0: memref<2x8x384xf32, #tpu.memory_space<vmem>>, %arg1: memref<384x192xbf16, #tpu.memory_space<vmem>>, %arg2: memref<2x8x64xf32, #tpu.memory_space<vmem>>) attributes {dimension_semantics = [], scalar_prefetch = 0 : i64, scratch_operands = 0 : i64, tpu.core_type = #tpu.core_type<tc>} {
    %c0 = arith.constant 0 : index
    %c0_0 = arith.constant 0 : index
    %c0_1 = arith.constant 0 : index
    %0 = vector.load %arg0[%c0, %c0_0, %c0_1] : memref<2x8x384xf32, #tpu.memory_space<vmem>>, vector<2x8x384xf32>
    %1 = arith.truncf %0 : vector<2x8x384xf32> to vector<2x8x384xbf16>
    %c0_2 = arith.constant 0 : index
    %c0_3 = arith.constant 0 : index
    %2 = vector.load %arg1[%c0_2, %c0_3] : memref<384x192xbf16, #tpu.memory_space<vmem>>, vector<384x192xbf16>
    %cst = arith.constant dense<0.000000e+00> : vector<2x8x192xf32>
    %3 = tpu.matmul %1, %2, %cst {dimension_numbers = #tpu.dot_dimension_numbers<[2], [0], [0, 1], [1], [0, 0, 0, 1, 1, 1], [], []>} : vector<2x8x384xbf16>, vector<384x192xbf16>, vector<2x8x192xf32> -> vector<2x8x192xf32>
    %4 = vector.extract_strided_slice %3 {offsets = [0, 0, 0], sizes = [2, 8, 64], strides = [1, 1, 1]} : vector<2x8x192xf32> to vector<2x8x64xf32>
    %5 = vector.extract_strided_slice %3 {offsets = [0, 0, 64], sizes = [2, 8, 64], strides = [1, 1, 1]} : vector<2x8x192xf32> to vector<2x8x64xf32>
    %6 = vector.extract_strided_slice %3 {offsets = [0, 0, 128], sizes = [2, 8, 64], strides = [1, 1, 1]} : vector<2x8x192xf32> to vector<2x8x64xf32>
    %cst_4 = arith.constant dense<0.000000e+00> : vector<2x8x8xf32>
    %7 = tpu.matmul %5, %4, %cst_4 {dimension_numbers = #tpu.dot_dimension_numbers<[2], [2], [1], [1], [0, 0, 0, 1, 1, 1], [0], [0]>} : vector<2x8x64xf32>, vector<2x8x64xf32>, vector<2x8x8xf32> -> vector<2x8x8xf32>
    %8 = tpu.iota {dimensions = array<i32: 0>} : vector<8x8xi32>
    %9 = tpu.iota {dimensions = array<i32: 1>} : vector<8x8xi32>
    %10 = arith.cmpi sle, %9, %8 : vector<8x8xi32>
    %cst_5 = arith.constant -1.000000e+30 : f32
    %11 = vector.shape_cast %10 : vector<8x8xi1> to vector<1x8x8xi1>
    %12 = vector.broadcast %11 : vector<1x8x8xi1> to vector<2x8x8xi1>
    %13 = vector.broadcast %cst_5 : f32 to vector<2x8x8xf32>
    %14 = arith.select %12, %7, %13 : vector<2x8x8xi1>, vector<2x8x8xf32>
    %cst_6 = arith.constant dense<0xFF800000> : vector<2x8xf32>
    %15 = vector.multi_reduction <maximumf>, %14, %cst_6 [2] : vector<2x8x8xf32> to vector<2x8xf32>
    %16 = vector.shape_cast %15 : vector<2x8xf32> to vector<2x8x1xf32>
    %17 = vector.broadcast %16 : vector<2x8x1xf32> to vector<2x8x8xf32>
    %18 = arith.subf %14, %17 : vector<2x8x8xf32>
    %19 = math.exp %18 : vector<2x8x8xf32>
    %cst_7 = arith.constant dense<0.000000e+00> : vector<2x8xf32>
    %20 = vector.multi_reduction <add>, %19, %cst_7 [2] : vector<2x8x8xf32> to vector<2x8xf32>
    %21 = vector.shape_cast %20 : vector<2x8xf32> to vector<2x8x1xf32>
    %22 = tpu.reciprocal %21 {approx = true} : vector<2x8x1xf32> -> vector<2x8x1xf32>
    %23 = vector.broadcast %22 : vector<2x8x1xf32> to vector<2x8x8xf32>
    %24 = arith.mulf %19, %23 : vector<2x8x8xf32>
    %cst_8 = arith.constant dense<0.000000e+00> : vector<2x8x64xf32>
    %25 = tpu.matmul %24, %6, %cst_8 {dimension_numbers = #tpu.dot_dimension_numbers<[2], [1], [1], [2], [0, 0, 0, 1, 1, 2], [0], [0]>} : vector<2x8x8xf32>, vector<2x8x64xf32>, vector<2x8x64xf32> -> vector<2x8x64xf32>
    %c0_9 = arith.constant 0 : index
    %c0_10 = arith.constant 0 : index
    %c0_11 = arith.constant 0 : index
    %26 = vector.load %arg2[%c0_9, %c0_10, %c0_11] : memref<2x8x64xf32, #tpu.memory_space<vmem>>, vector<2x8x64xf32>
    tpu.vector_store %arg2[%c0_9, %c0_10, %c0_11], %25 {strides = array<i32>} : memref<2x8x64xf32, #tpu.memory_space<vmem>>, vector<2x8x64xf32>,
    return
  }
}

</mosaic_0001>

<llo_original>
// kernel: tpu_custom_call.1
$region0: #{tpu_custom_call.1}
  #allocation0 [shape = 'u32[]', space=smem, size = 0x4, offset = 0x4, fixed_abs, tag = 'smem constant byte address 0x4 - core index']
  #allocation1 [shape = 'u32[144,128]{1,0:T(1,128)}', space=vmem, size = 0x12000, scoped, tag = 'internal scratch']
  %s0 = inlined_call_operand.vmem [shape: f32[2,8,384], index: 0, kind: input, shape index: {}]
  %s1 = inlined_call_operand.vmem [shape: bf16[384,192], index: 1, kind: input, shape index: {}]
  %s2 = inlined_call_operand.hbm [shape: f32[2,8,64], index: 2, kind: output, shape index: {}]
  %s3 = sld [smem:[#allocation0]]
  $region18: #{tpu_custom_call.1} parent=0
    _
  %s5 = ssub.s32 1, %s3
  %s6 = scalar_select 0, %s5, %s3
  $region1: #{tpu_custom_call.1} parent=0
    #allocation2 [shape = 'u8[8192]{0}', space=vmem, size = 0x2000, scoped, tag = 'output window, operand 0, single buffered']
    #allocation3 [shape = 's32[1]{0}', space=sflag, size = 0x4, scoped, tag = 'scoped memory for tpu_custom_call.1']
    %7 = vsyncpa [#allocation3], 0
    // Predicated region
    $region2: #{tpu_custom_call.1} parent=1 // pred_check
      _
    $region3: #{tpu_custom_call.1} parent=1 // pred_check_branch
      %9 = sbr.rel (0) target = $region5
    $region4: #{tpu_custom_call.1} parent=1 // pred_region
      _
    $region5: #{tpu_custom_call.1} parent=1 // pred_fallthru
      _
    // Predicated region
    $region6: #{tpu_custom_call.1} parent=1 // pred_check
      _
    $region7: #{tpu_custom_call.1} parent=1 // pred_check_branch
      %11 = sbr.rel (0) target = $region9
    $region8: #{tpu_custom_call.1} parent=1 // pred_region
      _
    $region9: #{tpu_custom_call.1} parent=1 // pred_fallthru
      _
    %v13 = vld [vmem:[%s0] sm:$0xff]
    %v14 = vld [vmem:[%s0 + $0x8] sm:$0xff]
    %v15 = vld [vmem:[%s0 + $0x10] sm:$0xff]
    %v16 = vld [vmem:[%s0 + $0x18] sm:$0xff]
    %v17 = vld [vmem:[%s0 + $0x20] sm:$0xff]
    %v18 = vld [vmem:[%s0 + $0x28] sm:$0xff]
    %v19 = vpack.c.bf16 %v13, %v13
    %v20 = vpack.c.bf16 %v14, %v14
    %v21 = vpack.c.bf16 %v15, %v15
    %v22 = vpack.c.bf16 %v16, %v16
    %v23 = vpack.c.bf16 %v17, %v17
    %v24 = vpack.c.bf16 %v18, %v18
    %v25 = vld [vmem:[%s1] sm:$0xff]
    %v26 = vld [vmem:[%s1 + $0x8] sm:$0xff]
    %v27 = vld [vmem:[%s1 + $0x10] sm:$0xff]
    %v28 = vld [vmem:[%s1 + $0x18] sm:$0xff]
    %v29 = vld [vmem:[%s1 + $0x20] sm:$0xff]
    %v30 = vld [vmem:[%s1 + $0x28] sm:$0xff]
    %v31 = vld [vmem:[%s1 + $0x30] sm:$0xff]
    %v32 = vld [vmem:[%s1 + $0x38] sm:$0xff]
    %v33 = vld [vmem:[%s1 + $0x40] sm:$0xff]
    %v34 = vld [vmem:[%s1 + $0x48] sm:$0xff]
    %v35 = vld [vmem:[%s1 + $0x50] sm:$0xff]
    %v36 = vld [vmem:[%s1 + $0x58] sm:$0xff]
    %v37 = vld [vmem:[%s1 + $0x60] sm:$0xff]
    %v38 = vld [vmem:[%s1 + $0x68] sm:$0xff]
    %v39 = vld [vmem:[%s1 + $0x70] sm:$0xff]
    %v40 = vld [vmem:[%s1 + $0x78] sm:$0xff]
    %v41 = vld [vmem:[%s1 + $0x80] sm:$0xff]
    %v42 = vld [vmem:[%s1 + $0x88] sm:$0xff]
    %v43 = vld [vmem:[%s1 + $0x90] sm:$0xff]
    %v44 = vld [vmem:[%s1 + $0x98] sm:$0xff]
    %v45 = vld [vmem:[%s1 + $0xa0] sm:$0xff]
    %v46 = vld [vmem:[%s1 + $0xa8] sm:$0xff]
    %v47 = vld [vmem:[%s1 + $0xb0] sm:$0xff]
    %v48 = vld [vmem:[%s1 + $0xb8] sm:$0xff]
    %v49 = vld [vmem:[%s1 + $0xc0] sm:$0xff]
    %v50 = vld [vmem:[%s1 + $0xc8] sm:$0xff]
    %v51 = vld [vmem:[%s1 + $0xd0] sm:$0xff]
    %v52 = vld [vmem:[%s1 + $0xd8] sm:$0xff]
    %v53 = vld [vmem:[%s1 + $0xe0] sm:$0xff]
    %v54 = vld [vmem:[%s1 + $0xe8] sm:$0xff]
    %v55 = vld [vmem:[%s1 + $0xf0] sm:$0xff]
    %v56 = vld [vmem:[%s1 + $0xf8] sm:$0xff]
    %v57 = vld [vmem:[%s1 + $0x100] sm:$0xff]
    %v58 = vld [vmem:[%s1 + $0x108] sm:$0xff]
    %v59 = vld [vmem:[%s1 + $0x110] sm:$0xff]
    %v60 = vld [vmem:[%s1 + $0x118] sm:$0xff]
    %v61 = vld [vmem:[%s1 + $0x120] sm:$0xff]
    %v62 = vld [vmem:[%s1 + $0x128] sm:$0xff]
    %v63 = vld [vmem:[%s1 + $0x130] sm:$0xff]
    %v64 = vld [vmem:[%s1 + $0x138] sm:$0xff]
    %v65 = vld [vmem:[%s1 + $0x140] sm:$0xff]
    %v66 = vld [vmem:[%s1 + $0x148] sm:$0xff]
    %v67 = vld [vmem:[%s1 + $0x150] sm:$0xff]
    %v68 = vld [vmem:[%s1 + $0x158] sm:$0xff]
    %v69 = vld [vmem:[%s1 + $0x160] sm:$0xff]
    %v70 = vld [vmem:[%s1 + $0x168] sm:$0xff]
    %v71 = vld [vmem:[%s1 + $0x170] sm:$0xff]
    %v72 = vld [vmem:[%s1 + $0x178] sm:$0xff]
    %v79 = vunpack.c.l.b16 %v19
    %v80 = vunpack.c.l.b16 %v20
    %v81 = vunpack.c.l.b16 %v21
    %v82 = vunpack.c.l.b16 %v22
    %v83 = vunpack.c.l.b16 %v23
    %v84 = vunpack.c.l.b16 %v24
    %v85 = vpack.c.b16 %v82, %v79
    %v86 = vpack.c.b16 %v83, %v80
    %v87 = vpack.c.b16 %v84, %v81
    %v139 = vunpack.c.l.b16 %v25
    %v140 = vunpack.c.h.b16 %v25
    %v141 = vunpack.c.l.b16 %v26
    %v142 = vunpack.c.h.b16 %v26
    %v143 = vunpack.c.l.b16 %v27
    %v144 = vunpack.c.h.b16 %v27
    %v145 = vunpack.c.l.b16 %v28
    %v146 = vunpack.c.h.b16 %v28
    %v147 = vunpack.c.l.b16 %v29
    %v148 = vunpack.c.h.b16 %v29
    %v149 = vunpack.c.l.b16 %v30
    %v150 = vunpack.c.h.b16 %v30
    %v151 = vunpack.c.l.b16 %v31
    %v152 = vunpack.c.h.b16 %v31
    %v153 = vunpack.c.l.b16 %v32
    %v154 = vunpack.c.h.b16 %v32
    %v155 = vunpack.c.l.b16 %v33
    %v156 = vunpack.c.h.b16 %v33
    %v157 = vunpack.c.l.b16 %v34
    %v158 = vunpack.c.h.b16 %v34
    %v159 = vunpack.c.l.b16 %v35
    %v160 = vunpack.c.h.b16 %v35
    %v161 = vunpack.c.l.b16 %v36
    %v162 = vunpack.c.h.b16 %v36
    %v163 = vunpack.c.l.b16 %v37
    %v164 = vunpack.c.h.b16 %v37
    %v165 = vunpack.c.l.b16 %v38
    %v166 = vunpack.c.h.b16 %v38
    %v167 = vunpack.c.l.b16 %v39
    %v168 = vunpack.c.h.b16 %v39
    %v169 = vunpack.c.l.b16 %v40
    %v170 = vunpack.c.h.b16 %v40
    %v171 = vunpack.c.l.b16 %v41
    %v172 = vunpack.c.h.b16 %v41
    %v173 = vunpack.c.l.b16 %v42
    %v174 = vunpack.c.h.b16 %v42
    %v175 = vunpack.c.l.b16 %v43
    %v176 = vunpack.c.h.b16 %v43
    %v177 = vunpack.c.l.b16 %v44
    %v178 = vunpack.c.h.b16 %v44
    %v179 = vunpack.c.l.b16 %v45
    %v180 = vunpack.c.h.b16 %v45
    %v181 = vunpack.c.l.b16 %v46
    %v182 = vunpack.c.h.b16 %v46
    %v183 = vunpack.c.l.b16 %v47
    %v184 = vunpack.c.h.b16 %v47
    %v185 = vunpack.c.l.b16 %v48
    %v186 = vunpack.c.h.b16 %v48
    %v187 = vunpack.c.l.b16 %v49
    %v188 = vunpack.c.h.b16 %v49
    %v189 = vunpack.c.l.b16 %v50
    %v190 = vunpack.c.h.b16 %v50
    %v191 = vunpack.c.l.b16 %v51
    %v192 = vunpack.c.h.b16 %v51
    %v193 = vunpack.c.l.b16 %v52
    %v194 = vunpack.c.h.b16 %v52
    %v195 = vunpack.c.l.b16 %v53
    %v196 = vunpack.c.h.b16 %v53
    %v197 = vunpack.c.l.b16 %v54
    %v198 = vunpack.c.h.b16 %v54
    %v199 = vunpack.c.l.b16 %v55
    %v200 = vunpack.c.h.b16 %v55
    %v201 = vunpack.c.l.b16 %v56
    %v202 = vunpack.c.h.b16 %v56
    %v203 = vunpack.c.l.b16 %v57
    %v204 = vunpack.c.h.b16 %v57
    %v205 = vunpack.c.l.b16 %v58
    %v206 = vunpack.c.h.b16 %v58
    %v207 = vunpack.c.l.b16 %v59
    %v208 = vunpack.c.h.b16 %v59
    %v209 = vunpack.c.l.b16 %v60
    %v210 = vunpack.c.h.b16 %v60
    %v211 = vunpack.c.l.b16 %v61
    %v212 = vunpack.c.h.b16 %v61
    %v213 = vunpack.c.l.b16 %v62
    %v214 = vunpack.c.h.b16 %v62
    %v215 = vunpack.c.l.b16 %v63
    %v216 = vunpack.c.h.b16 %v63
    %v217 = vunpack.c.l.b16 %v64
    %v218 = vunpack.c.h.b16 %v64
    %v219 = vunpack.c.l.b16 %v65
    %v220 = vunpack.c.h.b16 %v65
    %v221 = vunpack.c.l.b16 %v66
    %v222 = vunpack.c.h.b16 %v66
    %v223 = vunpack.c.l.b16 %v67
    %v224 = vunpack.c.h.b16 %v67
    %v225 = vunpack.c.l.b16 %v68
    %v226 = vunpack.c.h.b16 %v68
    %v227 = vunpack.c.l.b16 %v69
    %v228 = vunpack.c.h.b16 %v69
    %v229 = vunpack.c.l.b16 %v70
    %v230 = vunpack.c.h.b16 %v70
    %v231 = vunpack.c.l.b16 %v71
    %v232 = vunpack.c.h.b16 %v71
    %v233 = vunpack.c.l.b16 %v72
    %v234 = vunpack.c.h.b16 %v72
    %v235 = vpack.c.b16 %v141, %v139
    %v236 = vpack.c.b16 %v142, %v140
    %v237 = vpack.c.b16 %v145, %v143
    %v238 = vpack.c.b16 %v146, %v144
    %v239 = vpack.c.b16 %v149, %v147
    %v240 = vpack.c.b16 %v150, %v148
    %v241 = vpack.c.b16 %v153, %v151
    %v242 = vpack.c.b16 %v154, %v152
    %v243 = vpack.c.b16 %v157, %v155
    %v244 = vpack.c.b16 %v158, %v156
    %v245 = vpack.c.b16 %v161, %v159
    %v246 = vpack.c.b16 %v162, %v160
    %v247 = vpack.c.b16 %v165, %v163
    %v248 = vpack.c.b16 %v166, %v164
    %v249 = vpack.c.b16 %v169, %v167
    %v250 = vpack.c.b16 %v170, %v168
    %v251 = vpack.c.b16 %v173, %v171
    %v252 = vpack.c.b16 %v174, %v172
    %v253 = vpack.c.b16 %v177, %v175
    %v254 = vpack.c.b16 %v178, %v176
    %v255 = vpack.c.b16 %v181, %v179
    %v256 = vpack.c.b16 %v182, %v180
    %v257 = vpack.c.b16 %v185, %v183
    %v258 = vpack.c.b16 %v186, %v184
    %v259 = vpack.c.b16 %v189, %v187
    %v260 = vpack.c.b16 %v190, %v188
    %v261 = vpack.c.b16 %v193, %v191
    %v262 = vpack.c.b16 %v194, %v192
    %v263 = vpack.c.b16 %v197, %v195
    %v264 = vpack.c.b16 %v198, %v196
    %v265 = vpack.c.b16 %v201, %v199
    %v266 = vpack.c.b16 %v202, %v200
    %v267 = vpack.c.b16 %v205, %v203
    %v268 = vpack.c.b16 %v206, %v204
    %v269 = vpack.c.b16 %v209, %v207
    %v270 = vpack.c.b16 %v210, %v208
    %v271 = vpack.c.b16 %v213, %v211
    %v272 = vpack.c.b16 %v214, %v212
    %v273 = vpack.c.b16 %v217, %v215
    %v274 = vpack.c.b16 %v218, %v216
    %v275 = vpack.c.b16 %v221, %v219
    %v276 = vpack.c.b16 %v222, %v220
    %v277 = vpack.c.b16 %v225, %v223
    %v278 = vpack.c.b16 %v226, %v224
    %v279 = vpack.c.b16 %v229, %v227
    %v280 = vpack.c.b16 %v230, %v228
    %v281 = vpack.c.b16 %v233, %v231
    %v282 = vpack.c.b16 %v234, %v232
    %331 = vmatprep.subr.bf16.mxu0 %v236
    %332 = vmatpush1.bf16.msra.mxu0 %v235
    %333 = vmatprep.subr.bf16.mxu0 %v238
    %334 = vmatpush1.bf16.msra.mxu0 %v237
    %335 = vmatprep.subr.bf16.mxu0 %v240
    %336 = vmatpush1.bf16.msra.mxu0 %v239
    %337 = vmatprep.subr.bf16.mxu0 %v242
    %338 = vmatpush1.bf16.msra.mxu0 %v241
    %339 = vmatprep.subr.bf16.mxu0 %v244
    %340 = vmatpush1.bf16.msra.mxu0 %v243
    %341 = vmatprep.subr.bf16.mxu0 %v246
    %342 = vmatpush1.bf16.msra.mxu0 %v245
    %343 = vmatprep.subr.bf16.mxu0 %v248
    %344 = vmatpush1.bf16.msra.mxu0 %v247
    %345 = vmatprep.subr.bf16.mxu0 %v250
    %346 = vmatpush1.bf16.msra.mxu0 %v249
    %347 = vmatprep.subr.bf16.mxu0 %v252
    %348 = vmatpush1.bf16.msra.mxu0 %v251
    %349 = vmatprep.subr.bf16.mxu0 %v254
    %350 = vmatpush1.bf16.msra.mxu0 %v253
    %351 = vmatprep.subr.bf16.mxu0 %v256
    %352 = vmatpush1.bf16.msra.mxu0 %v255
    %353 = vmatprep.subr.bf16.mxu0 %v258
    %354 = vmatpush1.bf16.msra.mxu0 %v257
    %355 = vmatprep.subr.bf16.mxu0 %v260
    %356 = vmatpush1.bf16.msra.mxu0 %v259
    %357 = vmatprep.subr.bf16.mxu0 %v262
    %358 = vmatpush1.bf16.msra.mxu0 %v261
    %359 = vmatprep.subr.bf16.mxu0 %v264
    %360 = vmatpush1.bf16.msra.mxu0 %v263
    %361 = vmatprep.subr.bf16.mxu0 %v266
    %362 = vmatpush1.bf16.msra.mxu0 %v265
    %363 = vmatprep.mubr.bf16.mxu0 %v86
    %364 = vmatmul.mubr.bf16.gmra.mrb[0].mxu0 %v85
    %v365 = vpop.f32.mrb[0].mxu0
    %v366 = vadd.f32 0.0, %v365
    %v367 = vpop.f32.mrb[0].mxu0
    %v368 = vadd.f32 0.0, %v367
    %v369 = vpop.f32.mrb[0].mxu0
    %v370 = vadd.f32 0.0, %v369
    %v371 = vpop.f32.mrb[0].mxu0
    %v372 = vadd.f32 0.0, %v371
    %373 = vdwg.mxu0
    %374 = vmatprep.subr.bf16.mxu0 %v268
    %375 = vmatpush1.bf16.msra.mxu0 %v267
    %376 = vmatprep.subr.bf16.mxu0 %v270
    %377 = vmatpush1.bf16.msra.mxu0 %v269
    %378 = vmatprep.subr.bf16.mxu0 %v272
    %379 = vmatpush1.bf16.msra.mxu0 %v271
    %380 = vmatprep.subr.bf16.mxu0 %v274
    %381 = vmatpush1.bf16.msra.mxu0 %v273
    %382 = vmatprep.subr.bf16.mxu0 %v276
    %383 = vmatpush1.bf16.msra.mxu0 %v275
    %384 = vmatprep.subr.bf16.mxu0 %v278
    %385 = vmatpush1.bf16.msra.mxu0 %v277
    %386 = vmatprep.subr.bf16.mxu0 %v280
    %387 = vmatpush1.bf16.msra.mxu0 %v279
    %388 = vmatprep.subr.bf16.mxu0 %v282
    %389 = vmatpush1.bf16.msra.mxu0 %v281
    %390 = vmatprep.subr.bf16.mxu0 0
    %391 = vmatpush1.bf16.msra.mxu0 0
    %392 = vmatprep.subr.bf16.mxu0 0
    %393 = vmatpush1.bf16.msra.mxu0 0
    %394 = vmatprep.subr.bf16.mxu0 0
    %395 = vmatpush1.bf16.msra.mxu0 0
    %396 = vmatprep.subr.bf16.mxu0 0
    %397 = vmatpush1.bf16.msra.mxu0 0
    %398 = vmatprep.subr.bf16.mxu0 0
    %399 = vmatpush1.bf16.msra.mxu0 0
    %400 = vmatprep.subr.bf16.mxu0 0
    %401 = vmatpush1.bf16.msra.mxu0 0
    %402 = vmatprep.subr.bf16.mxu0 0
    %403 = vmatpush1.bf16.msra.mxu0 0
    %404 = vmatprep.subr.bf16.mxu0 0
    %405 = vmatpush1.bf16.msra.mxu0 0
    %406 = vmatprep.mubr.bf16.mxu0 0
    %407 = vmatmul.mubr.bf16.gmra.mrb[0].mxu0 %v87
    %v408 = vpop.f32.mrb[0].mxu0
    %v409 = vadd.f32 %v366, %v408
    %v410 = vpop.f32.mrb[0].mxu0
    %v411 = vadd.f32 %v368, %v410
    %v412 = vpop.f32.mrb[0].mxu0
    %v413 = vadd.f32 %v370, %v412
    %v414 = vpop.f32.mrb[0].mxu0
    %v415 = vadd.f32 %v372, %v414
    %416 = vdwg.mxu0
    %418 = vrot.lane.b32.xlu0 %v409, 64
    %v419 = vpop.permute.xlu0 %418
    %vm420 = vcmask 523264
    %v421 = vsel %vm420, %v419, 0
    %v423 = vsel %vm420, %v409, 0
    %425 = vmatprep.subr.mxu0 0.0
    %426 = vmatpush1.xpose.msra.mxu0 %v423
    %427 = vmatprep.subr.mxu0 0.0
    %428 = vmatpush1.xpose.msra.mxu0 0.0
    %429 = vmatprep.subr.mxu0 0.0
    %430 = vmatpush1.xpose.msra.mxu0 0.0
    %431 = vmatprep.subr.mxu0 0.0
    %432 = vmatpush1.xpose.msra.mxu0 0.0
    %433 = vmatprep.subr.mxu0 0.0
    %434 = vmatpush1.xpose.msra.mxu0 0.0
    %435 = vmatprep.subr.mxu0 0.0
    %436 = vmatpush1.xpose.msra.mxu0 0.0
    %437 = vmatprep.subr.mxu0 0.0
    %438 = vmatpush1.xpose.msra.mxu0 0.0
    %439 = vmatprep.subr.mxu0 0.0
    %440 = vmatpush1.xpose.msra.mxu0 0.0
    %441 = vmatprep.subr.mxu0 0.0
    %442 = vmatpush1.xpose.msra.mxu0 0.0
    %443 = vmatprep.subr.mxu0 0.0
    %444 = vmatpush1.xpose.msra.mxu0 0.0
    %445 = vmatprep.subr.mxu0 0.0
    %446 = vmatpush1.xpose.msra.mxu0 0.0
    %447 = vmatprep.subr.mxu0 0.0
    %448 = vmatpush1.xpose.msra.mxu0 0.0
    %449 = vmatprep.subr.mxu0 0.0
    %450 = vmatpush1.xpose.msra.mxu0 0.0
    %451 = vmatprep.subr.mxu0 0.0
    %452 = vmatpush1.xpose.msra.mxu0 0.0
    %453 = vmatprep.subr.mxu0 0.0
    %454 = vmatpush1.xpose.msra.mxu0 0.0
    %455 = vmatprep.subr.mxu0 0.0
    %456 = vmatpush1.xpose.msra.mxu0 0.0
    %457 = vmatprep.subr.mxu0 0.0
    %458 = vmatpush1.xpose.msra.mxu0 0.0
    %459 = vmatprep.subr.mxu0 0.0
    %460 = vmatpush1.xpose.msra.mxu0 0.0
    %461 = vmatprep.subr.mxu0 0.0
    %462 = vmatpush1.xpose.msra.mxu0 0.0
    %463 = vmatprep.subr.mxu0 0.0
    %464 = vmatpush1.xpose.msra.mxu0 0.0
    %465 = vmatprep.subr.mxu0 0.0
    %466 = vmatpush1.xpose.msra.mxu0 0.0
    %467 = vmatprep.subr.mxu0 0.0
    %468 = vmatpush1.xpose.msra.mxu0 0.0
    %469 = vmatprep.subr.mxu0 0.0
    %470 = vmatpush1.xpose.msra.mxu0 0.0
    %471 = vmatprep.subr.mxu0 0.0
    %472 = vmatpush1.xpose.msra.mxu0 0.0
    %473 = vmatprep.subr.mxu0 0.0
    %474 = vmatpush1.xpose.msra.mxu0 0.0
    %475 = vmatprep.subr.mxu0 0.0
    %476 = vmatpush1.xpose.msra.mxu0 0.0
    %477 = vmatprep.subr.mxu0 0.0
    %478 = vmatpush1.xpose.msra.mxu0 0.0
    %479 = vmatprep.subr.mxu0 0.0
    %480 = vmatpush1.xpose.msra.mxu0 0.0
    %481 = vmatprep.subr.mxu0 0.0
    %482 = vmatpush1.xpose.msra.mxu0 0.0
    %483 = vmatprep.subr.mxu0 0.0
    %484 = vmatpush1.xpose.msra.mxu0 0.0
    %485 = vmatprep.subr.mxu0 0.0
    %486 = vmatpush1.xpose.msra.mxu0 0.0
    %487 = vmatprep.subr.mxu0 0.0
    %488 = vmatpush1.xpose.msra.mxu0 0.0
    %489 = vmatprep.mubr.f32.mxu0 0.0
    %490 = vmatmul.mubr.f32.gmra.mrb[0].mxu0 %v421
    %v491 = vpop.f32.mrb[0].mxu0
    %v492 = vadd.f32 0.0, %v491
    %v493 = vpop.f32.mrb[0].mxu0
    %494 = vdwg.mxu0
    %496 = vrot.lane.b32.xlu0 %v413, 64
    %v497 = vpop.permute.xlu0 %496
    %v498 = vsel %vm420, %v497, 0
    %v500 = vsel %vm420, %v413, 0
    %502 = vmatprep.subr.mxu0 0.0
    %503 = vmatpush1.xpose.msra.mxu0 %v500
    %504 = vmatprep.subr.mxu0 0.0
    %505 = vmatpush1.xpose.msra.mxu0 0.0
    %506 = vmatprep.subr.mxu0 0.0
    %507 = vmatpush1.xpose.msra.mxu0 0.0
    %508 = vmatprep.subr.mxu0 0.0
    %509 = vmatpush1.xpose.msra.mxu0 0.0
    %510 = vmatprep.subr.mxu0 0.0
    %511 = vmatpush1.xpose.msra.mxu0 0.0
    %512 = vmatprep.subr.mxu0 0.0
    %513 = vmatpush1.xpose.msra.mxu0 0.0
    %514 = vmatprep.subr.mxu0 0.0
    %515 = vmatpush1.xpose.msra.mxu0 0.0
    %516 = vmatprep.subr.mxu0 0.0
    %517 = vmatpush1.xpose.msra.mxu0 0.0
    %518 = vmatprep.subr.mxu0 0.0
    %519 = vmatpush1.xpose.msra.mxu0 0.0
    %520 = vmatprep.subr.mxu0 0.0
    %521 = vmatpush1.xpose.msra.mxu0 0.0
    %522 = vmatprep.subr.mxu0 0.0
    %523 = vmatpush1.xpose.msra.mxu0 0.0
    %524 = vmatprep.subr.mxu0 0.0
    %525 = vmatpush1.xpose.msra.mxu0 0.0
    %526 = vmatprep.subr.mxu0 0.0
    %527 = vmatpush1.xpose.msra.mxu0 0.0
    %528 = vmatprep.subr.mxu0 0.0
    %529 = vmatpush1.xpose.msra.mxu0 0.0
    %530 = vmatprep.subr.mxu0 0.0
    %531 = vmatpush1.xpose.msra.mxu0 0.0
    %532 = vmatprep.subr.mxu0 0.0
    %533 = vmatpush1.xpose.msra.mxu0 0.0
    %534 = vmatprep.subr.mxu0 0.0
    %535 = vmatpush1.xpose.msra.mxu0 0.0
    %536 = vmatprep.subr.mxu0 0.0
    %537 = vmatpush1.xpose.msra.mxu0 0.0
    %538 = vmatprep.subr.mxu0 0.0
    %539 = vmatpush1.xpose.msra.mxu0 0.0
    %540 = vmatprep.subr.mxu0 0.0
    %541 = vmatpush1.xpose.msra.mxu0 0.0
    %542 = vmatprep.subr.mxu0 0.0
    %543 = vmatpush1.xpose.msra.mxu0 0.0
    %544 = vmatprep.subr.mxu0 0.0
    %545 = vmatpush1.xpose.msra.mxu0 0.0
    %546 = vmatprep.subr.mxu0 0.0
    %547 = vmatpush1.xpose.msra.mxu0 0.0
    %548 = vmatprep.subr.mxu0 0.0
    %549 = vmatpush1.xpose.msra.mxu0 0.0
    %550 = vmatprep.subr.mxu0 0.0
    %551 = vmatpush1.xpose.msra.mxu0 0.0
    %552 = vmatprep.subr.mxu0 0.0
    %553 = vmatpush1.xpose.msra.mxu0 0.0
    %554 = vmatprep.subr.mxu0 0.0
    %555 = vmatpush1.xpose.msra.mxu0 0.0
    %556 = vmatprep.subr.mxu0 0.0
    %557 = vmatpush1.xpose.msra.mxu0 0.0
    %558 = vmatprep.subr.mxu0 0.0
    %559 = vmatpush1.xpose.msra.mxu0 0.0
    %560 = vmatprep.subr.mxu0 0.0
    %561 = vmatpush1.xpose.msra.mxu0 0.0
    %562 = vmatprep.subr.mxu0 0.0
    %563 = vmatpush1.xpose.msra.mxu0 0.0
    %564 = vmatprep.subr.mxu0 0.0
    %565 = vmatpush1.xpose.msra.mxu0 0.0
    %566 = vmatprep.mubr.f32.mxu0 0.0
    %567 = vmatmul.mubr.f32.gmra.mrb[0].mxu0 %v498
    %v568 = vpop.f32.mrb[0].mxu0
    %v569 = vadd.f32 0.0, %v568
    %v570 = vpop.f32.mrb[0].mxu0
    %571 = vdwg.mxu0
    %v572 = vlaneseq
    %v573 = vshrl.u32 %v572, 7
    %v574 = vlaneseq
    %v575 = vand.u32 %v574, 127
    %vm576 = vcmp.le.s32.totalorder %v575, %v573
    %v577 = vsel %vm576, 1, 0
    %vm578 = vcmp.eq.s32.totalorder %v577, 1
    %v579 = vsel %vm578, %v492, -1e+30
    %v580 = vsel %vm578, %v569, -1e+30
    %vm581 = vcmask 64512
    %v582 = vsel %vm581, %v579, -inf
    %583 = vmax.xlane.f32.xlu0 %v582
    %v584 = vpop.xlane.xlu0 %583
    %v585 = vsel %vm581, %v580, -inf
    %586 = vmax.xlane.f32.xlu0 %v585
    %v587 = vpop.xlane.xlu0 %586
    %v588 = vsub.f32 %v579, %v584
    %v589 = vsub.f32 %v580, %v587
    %v590 = vmul.f32 %v588, 1.442695
    %v591 = vpow.pop %v590
    %v592 = vmul.f32 %v589, 1.442695
    %v593 = vpow.pop %v592
    %v594 = vsel %vm581, %v591, 0.0
    %595 = vadd.xlane.f32.xlu0 %v594
    %v596 = vpop.xlane.xlu0 %595
    %v597 = vsel %vm581, %v593, 0.0
    %598 = vadd.xlane.f32.xlu0 %v597
    %v599 = vpop.xlane.xlu0 %598
    %v600 = vrcp.pop %v596
    %v601 = vrcp.pop %v599
    %v602 = vmul.f32 %v591, %v600
    %v603 = vmul.f32 %v593, %v601
    %v605 = vsel %vm581, %v602, 0
    %607 = vmatprep.subr.mxu0 0.0
    %608 = vmatpush1.msra.mxu0 %v411
    %609 = vmatprep.subr.mxu0 0.0
    %610 = vmatpush1.msra.mxu0 0.0
    %611 = vmatprep.subr.mxu0 0.0
    %612 = vmatpush1.msra.mxu0 0.0
    %613 = vmatprep.subr.mxu0 0.0
    %614 = vmatpush1.msra.mxu0 0.0
    %615 = vmatprep.subr.mxu0 0.0
    %616 = vmatpush1.msra.mxu0 0.0
    %617 = vmatprep.subr.mxu0 0.0
    %618 = vmatpush1.msra.mxu0 0.0
    %619 = vmatprep.subr.mxu0 0.0
    %620 = vmatpush1.msra.mxu0 0.0
    %621 = vmatprep.subr.mxu0 0.0
    %622 = vmatpush1.msra.mxu0 0.0
    %623 = vmatprep.subr.mxu0 0.0
    %624 = vmatpush1.msra.mxu0 0.0
    %625 = vmatprep.subr.mxu0 0.0
    %626 = vmatpush1.msra.mxu0 0.0
    %627 = vmatprep.subr.mxu0 0.0
    %628 = vmatpush1.msra.mxu0 0.0
    %629 = vmatprep.subr.mxu0 0.0
    %630 = vmatpush1.msra.mxu0 0.0
    %631 = vmatprep.subr.mxu0 0.0
    %632 = vmatpush1.msra.mxu0 0.0
    %633 = vmatprep.subr.mxu0 0.0
    %634 = vmatpush1.msra.mxu0 0.0
    %635 = vmatprep.subr.mxu0 0.0
    %636 = vmatpush1.msra.mxu0 0.0
    %637 = vmatprep.subr.mxu0 0.0
    %638 = vmatpush1.msra.mxu0 0.0
    %639 = vmatprep.subr.mxu0 0.0
    %640 = vmatpush1.msra.mxu0 0.0
    %641 = vmatprep.subr.mxu0 0.0
    %642 = vmatpush1.msra.mxu0 0.0
    %643 = vmatprep.subr.mxu0 0.0
    %644 = vmatpush1.msra.mxu0 0.0
    %645 = vmatprep.subr.mxu0 0.0
    %646 = vmatpush1.msra.mxu0 0.0
    %647 = vmatprep.subr.mxu0 0.0
    %648 = vmatpush1.msra.mxu0 0.0
    %649 = vmatprep.subr.mxu0 0.0
    %650 = vmatpush1.msra.mxu0 0.0
    %651 = vmatprep.subr.mxu0 0.0
    %652 = vmatpush1.msra.mxu0 0.0
    %653 = vmatprep.subr.mxu0 0.0
    %654 = vmatpush1.msra.mxu0 0.0
    %655 = vmatprep.subr.mxu0 0.0
    %656 = vmatpush1.msra.mxu0 0.0
    %657 = vmatprep.subr.mxu0 0.0
    %658 = vmatpush1.msra.mxu0 0.0
    %659 = vmatprep.subr.mxu0 0.0
    %660 = vmatpush1.msra.mxu0 0.0
    %661 = vmatprep.subr.mxu0 0.0
    %662 = vmatpush1.msra.mxu0 0.0
    %663 = vmatprep.subr.mxu0 0.0
    %664 = vmatpush1.msra.mxu0 0.0
    %665 = vmatprep.subr.mxu0 0.0
    %666 = vmatpush1.msra.mxu0 0.0
    %667 = vmatprep.subr.mxu0 0.0
    %668 = vmatpush1.msra.mxu0 0.0
    %669 = vmatprep.subr.mxu0 0.0
    %670 = vmatpush1.msra.mxu0 0.0
    %671 = vmatprep.mubr.f32.mxu0 0.0
    %672 = vmatmul.mubr.f32.gmra.mrb[0].mxu0 %v605
    %v673 = vpop.f32.mrb[0].mxu0
    %v674 = vadd.f32 0.0, %v673
    %v675 = vpop.f32.mrb[0].mxu0
    %676 = vdwg.mxu0
    %v678 = vsel %vm581, %v603, 0
    %680 = vmatprep.subr.mxu0 0.0
    %681 = vmatpush1.msra.mxu0 %v415
    %682 = vmatprep.subr.mxu0 0.0
    %683 = vmatpush1.msra.mxu0 0.0
    %684 = vmatprep.subr.mxu0 0.0
    %685 = vmatpush1.msra.mxu0 0.0
    %686 = vmatprep.subr.mxu0 0.0
    %687 = vmatpush1.msra.mxu0 0.0
    %688 = vmatprep.subr.mxu0 0.0
    %689 = vmatpush1.msra.mxu0 0.0
    %690 = vmatprep.subr.mxu0 0.0
    %691 = vmatpush1.msra.mxu0 0.0
    %692 = vmatprep.subr.mxu0 0.0
    %693 = vmatpush1.msra.mxu0 0.0
    %694 = vmatprep.subr.mxu0 0.0
    %695 = vmatpush1.msra.mxu0 0.0
    %696 = vmatprep.subr.mxu0 0.0
    %697 = vmatpush1.msra.mxu0 0.0
    %698 = vmatprep.subr.mxu0 0.0
    %699 = vmatpush1.msra.mxu0 0.0
    %700 = vmatprep.subr.mxu0 0.0
    %701 = vmatpush1.msra.mxu0 0.0
    %702 = vmatprep.subr.mxu0 0.0
    %703 = vmatpush1.msra.mxu0 0.0
    %704 = vmatprep.subr.mxu0 0.0
    %705 = vmatpush1.msra.mxu0 0.0
    %706 = vmatprep.subr.mxu0 0.0
    %707 = vmatpush1.msra.mxu0 0.0
    %708 = vmatprep.subr.mxu0 0.0
    %709 = vmatpush1.msra.mxu0 0.0
    %710 = vmatprep.subr.mxu0 0.0
    %711 = vmatpush1.msra.mxu0 0.0
    %712 = vmatprep.subr.mxu0 0.0
    %713 = vmatpush1.msra.mxu0 0.0
    %714 = vmatprep.subr.mxu0 0.0
    %715 = vmatpush1.msra.mxu0 0.0
    %716 = vmatprep.subr.mxu0 0.0
    %717 = vmatpush1.msra.mxu0 0.0
    %718 = vmatprep.subr.mxu0 0.0
    %719 = vmatpush1.msra.mxu0 0.0
    %720 = vmatprep.subr.mxu0 0.0
    %721 = vmatpush1.msra.mxu0 0.0
    %722 = vmatprep.subr.mxu0 0.0
    %723 = vmatpush1.msra.mxu0 0.0
    %724 = vmatprep.subr.mxu0 0.0
    %725 = vmatpush1.msra.mxu0 0.0
    %726 = vmatprep.subr.mxu0 0.0
    %727 = vmatpush1.msra.mxu0 0.0
    %728 = vmatprep.subr.mxu0 0.0
    %729 = vmatpush1.msra.mxu0 0.0
    %730 = vmatprep.subr.mxu0 0.0
    %731 = vmatpush1.msra.mxu0 0.0
    %732 = vmatprep.subr.mxu0 0.0
    %733 = vmatpush1.msra.mxu0 0.0
    %734 = vmatprep.subr.mxu0 0.0
    %735 = vmatpush1.msra.mxu0 0.0
    %736 = vmatprep.subr.mxu0 0.0
    %737 = vmatpush1.msra.mxu0 0.0
    %738 = vmatprep.subr.mxu0 0.0
    %739 = vmatpush1.msra.mxu0 0.0
    %740 = vmatprep.subr.mxu0 0.0
    %741 = vmatpush1.msra.mxu0 0.0
    %742 = vmatprep.subr.mxu0 0.0
    %743 = vmatpush1.msra.mxu0 0.0
    %744 = vmatprep.mubr.f32.mxu0 0.0
    %745 = vmatmul.mubr.f32.gmra.mrb[0].mxu0 %v678
    %v746 = vpop.f32.mrb[0].mxu0
    %v747 = vadd.f32 0.0, %v746
    %v748 = vpop.f32.mrb[0].mxu0
    %749 = vdwg.mxu0
    %750 = vst.msk [vmem:[#allocation2] sm:$0xff] %vm420, %v674
    %751 = vst.msk [vmem:[#allocation2 + $0x8] sm:$0xff] %vm420, %v747
    // Predicated region
    $region10: #{tpu_custom_call.1} parent=1 // pred_check
      _
    $region11: #{tpu_custom_call.1} parent=1 // pred_check_branch
      %753 = sbr.rel (0) target = $region13
    $region12: #{tpu_custom_call.1} parent=1 // pred_region
      %s755 = ssub.s32 256, 256
      %756 = vsyncadd [#allocation3], %s755
      %s757 = sshll.u32 [#allocation2], 4
      %s758 = int_to_ptr.vmem [resolvable:$true] %s757
      %763 = dma.vmem_to_hbm [thread:$0]  %s758, 256, %s2, [#allocation3], 128, 128, 8
    $region13: #{tpu_custom_call.1} parent=1 // pred_fallthru
      _
    // Predicated region
    $region14: #{tpu_custom_call.1} parent=1 // pred_check
      _
    $region15: #{tpu_custom_call.1} parent=1 // pred_check_branch
      %765 = sbr.rel (0) target = $region17
    $region16: #{tpu_custom_call.1} parent=1 // pred_region
      %766 = dma.done [#allocation3], 256
    $region17: #{tpu_custom_call.1} parent=1 // pred_fallthru
      _
    %767 = vsyncpa [#allocation3], 1

</llo_original>
